<compile_context>
chip_gen: v7x
topology: tpu7x:2x2x1
jax: 0.10.0
libtpu: 0.0.40
codegen_flags: <defaults>
</compile_context>

<pallas_src>
import functools

import jax
import jax.numpy as jnp
from jax.experimental import pallas as pl
from jax.experimental.pallas import tpu as pltpu


# --------------------------------------------------------------------------- #
# Kernel body
# --------------------------------------------------------------------------- #
def _crelu_kernel(bias_ref, x_ref, o_ref):
    # bias_ref: (1,) f32 in SMEM (scalar prefetch); x_ref/o_ref: lane-dense VMEM tiles.
    b = bias_ref[0]
    x = x_ref[...]
    # Compare in f32 (matches torch's promotion of x against the f32 bias
    # parameter), then multiply by the mask (not a select) so NaN inputs
    # propagate and masked negatives yield -0.0, exactly like the torch module.
    pred = x.astype(jnp.float32) >= b
    o_ref[...] = x * pred.astype(x.dtype)


# --------------------------------------------------------------------------- #
# Sizing helpers
# --------------------------------------------------------------------------- #
_LANE_CANDIDATES = (4096, 2048, 1024, 512, 256, 128)


def _pick_lane(total):
    for lane in _LANE_CANDIDATES:
        if total % lane == 0:
            return lane
    return None


@functools.lru_cache(maxsize=1)
def _hw_sizes():
    """(block_bytes, vmem_limit_bytes) chosen per TPU generation."""
    vmem_cap = 64 * 1024 * 1024  # conservative default = v7x per-TC VMEM
    try:
        info = pltpu.get_tpu_info()
        vmem_cap = int(getattr(info, "vmem_capacity_bytes", vmem_cap))
    except Exception:
        pass
    if vmem_cap > 96 * 1024 * 1024:
        # v5e / v6e: 128 MiB physical VMEM.  4 x 12 MiB pipeline footprint = 48 MiB.
        return 12 * 1024 * 1024, 64 * 1024 * 1024
    # v7x-class: 64 MiB physical VMEM.  4 x 8 MiB pipeline footprint = 32 MiB.
    return 8 * 1024 * 1024, 48 * 1024 * 1024


def _block_rows(rows, lane, itemsize, target_block_bytes):
    """Pick a sublane-aligned block height that keeps the grid pipelined."""
    sub = max(8, 32 // itemsize)  # f32 -> 8, bf16 -> 16, int8/fp8 -> 32
    if rows <= 4 * sub:
        # Tiny tensor: one full-extent block (legal for any row count).
        return rows
    target_rows = max(sub, (target_block_bytes // (lane * itemsize)) // sub * sub)
    # Keep >= ~4 grid steps so in/out DMA double-buffering (and v7x 2-TC
    # sharding) actually engages instead of collapsing to a serial single step.
    min_steps = 4
    per_step = -(-rows // min_steps)                  # cdiv(rows, min_steps)
    per_step = ((per_step + sub - 1) // sub) * sub    # round up to sublane multiple
    return max(sub, min(target_rows, per_step))


# --------------------------------------------------------------------------- #
# pallas_call wrapper on a lane-dense (rows, lane) view
# --------------------------------------------------------------------------- #
def _crelu_2d(x2d, bias_f32, block_rows, vmem_limit):
    rows, lane = x2d.shape
    grid = (pl.cdiv(rows, block_rows),)
    return pl.pallas_call(
        _crelu_kernel,
        out_shape=jax.ShapeDtypeStruct((rows, lane), x2d.dtype),
        grid_spec=pltpu.PrefetchScalarGridSpec(
            num_scalar_prefetch=1,
            grid=grid,
            in_specs=[
                pl.BlockSpec((block_rows, lane), lambda i, b_sref: (i, 0)),
            ],
            out_specs=pl.BlockSpec((block_rows, lane), lambda i, b_sref: (i, 0)),
        ),
        compiler_params=pltpu.CompilerParams(
            dimension_semantics=("parallel",),  # lets v7x shard the grid across 2 TCs
            vmem_limit_bytes=vmem_limit,
        ),
    )(bias_f32, x2d)


@jax.jit
def crelu(x, bias):
    """x: any-shaped float array (NCHW in the torch module). bias: (1,) float array."""
    orig_shape = x.shape
    total = x.size
    itemsize = jnp.dtype(x.dtype).itemsize

    bias_f32 = bias.reshape(-1).astype(jnp.float32)[:1]
    block_bytes, vmem_limit = _hw_sizes()

    flat = x.reshape(-1)  # free: row-major contiguous view

    lane = _pick_lane(total)
    if lane is not None:
        rows = total // lane
        br = _block_rows(rows, lane, itemsize, block_bytes)
        out2d = _crelu_2d(flat.reshape(rows, lane), bias_f32, br, vmem_limit)
        return out2d.reshape(orig_shape)

    # Rare fallback: element count not a multiple of 128.  Run the kernel on
    # the lane-aligned prefix and handle the (<128-element) tail with plain
    # XLA ops -- no full-tensor pad/slice passes over HBM.
    lane = 128
    prefix = (total // lane) * lane
    tail = total - prefix
    pieces = []
    if prefix:
        rows = prefix // lane
        br = _block_rows(rows, lane, itemsize, block_bytes)
        out_pre = _crelu_2d(flat[:prefix].reshape(rows, lane), bias_f32, br, vmem_limit)
        pieces.append(out_pre.reshape(-1))
    if tail:
        xt = flat[prefix:]
        pieces.append(xt * (xt.astype(jnp.float32) >= bias_f32[0]).astype(xt.dtype))
    out_flat = pieces[0] if len(pieces) == 1 else jnp.concatenate(pieces)
    return out_flat.reshape(orig_shape)


def crelu_reference(x, bias):
    # Mirrors the torch forward: x * (x >= bias).float()
    b = bias.reshape((1,) * x.ndim).astype(jnp.float32)
    return x * (x >= b).astype(x.dtype)


if __name__ == "__main__":
    key = jax.random.PRNGKey(0)

    # Small NCHW feature map consistent with the module's usage.
    N, C, H, W = 2, 4, 16, 16
    x = jax.random.normal(key, (N, C, H, W), dtype=jnp.float32)

    # Default torch parameter init: bias = 0.7
    bias = jnp.array([0.7], dtype=jnp.float32)

    out = jax.block_until_ready(crelu(x, bias))
    ref = crelu_reference(x, bias)
    assert out.shape == x.shape
    assert out.dtype == x.dtype
    assert jnp.allclose(out, ref, atol=1e-6, rtol=1e-6)

    # Extra coverage: odd element count exercises the prefix+tail fallback path.
    x_odd = jax.random.normal(jax.random.PRNGKey(1), (2, 3, 5, 7), dtype=jnp.float32)
    out_odd = jax.block_until_ready(crelu(x_odd, bias))
    assert jnp.allclose(out_odd, crelu_reference(x_odd, bias), atol=1e-6, rtol=1e-6)

    print("KERNEL_OK")
</pallas_src>

<mosaic_0001>
module attributes {stable_mosaic.version = 11 : i64} {
  func.func @_crelu_kernel(%arg0: i32, %arg1: memref<1xf32, #tpu.memory_space<smem>>, %arg2: memref<1x2048xf32, #tpu.memory_space<vmem>>, %arg3: memref<1x2048xf32, #tpu.memory_space<vmem>>) attributes {dimension_semantics = [#tpu.dimension_semantics<parallel>], iteration_bounds = array<i64: 1>, scalar_prefetch = 1 : i64, scratch_operands = 0 : i64, tpu.core_type = #tpu.core_type<tc>, window_params = [{transform_indices = @transform_0, window_bounds = array<i64: 1, 2048>}, {transform_indices = @transform_1, window_bounds = array<i64: 1, 2048>}]} {
    %c0 = arith.constant 0 : index
    %0 = memref.load %arg1[%c0] : memref<1xf32, #tpu.memory_space<smem>>
    %c0_0 = arith.constant 0 : index
    %c0_1 = arith.constant 0 : index
    %1 = vector.load %arg2[%c0_0, %c0_1] : memref<1x2048xf32, #tpu.memory_space<vmem>>, vector<1x2048xf32>
    %2 = vector.broadcast %0 : f32 to vector<1x2048xf32>
    %3 = arith.cmpf oge, %1, %2 : vector<1x2048xf32>
    %4 = arith.extui %3 : vector<1x2048xi1> to vector<1x2048xi32>
    %5 = arith.sitofp %4 : vector<1x2048xi32> to vector<1x2048xf32>
    %6 = arith.mulf %1, %5 : vector<1x2048xf32>
    %c0_2 = arith.constant 0 : index
    %c0_3 = arith.constant 0 : index
    %7 = vector.load %arg3[%c0_2, %c0_3] : memref<1x2048xf32, #tpu.memory_space<vmem>>, vector<1x2048xf32>
    tpu.vector_store %arg3[%c0_2, %c0_3], %6 {strides = array<i32>} : memref<1x2048xf32, #tpu.memory_space<vmem>>, vector<1x2048xf32>,
    return
  }
  func.func @transform_0(%arg0: i32, %arg1: memref<1xf32, #tpu.memory_space<smem>>) -> (i32, i32) {
    %c0_i32 = arith.constant 0 : i32
    %c0_i32_0 = arith.constant 0 : i32
    return %arg0, %c0_i32 : i32, i32
  }
  func.func @transform_1(%arg0: i32, %arg1: memref<1xf32, #tpu.memory_space<smem>>) -> (i32, i32) {
    %c0_i32 = arith.constant 0 : i32
    %c0_i32_0 = arith.constant 0 : i32
    return %arg0, %c0_i32 : i32, i32
  }
}

</mosaic_0001>

<llo_original>
// kernel: crelu.1
$region0: #{crelu.1}
  #allocation0 [shape = 'u32[]', space=smem, size = 0x4, offset = 0x4, fixed_abs, tag = 'smem constant byte address 0x4 - core index']
  #allocation1 [shape = 'u32[144,128]{1,0:T(1,128)}', space=vmem, size = 0x12000, scoped, tag = 'internal scratch']
  #allocation2 [shape = 's32[1]{0}', space=sflag, size = 0x4, scoped, tag = 'scoped memory for crelu.1']
  #allocation3 [shape = 'f32[1]{0:T(128)S(6)}', space=smem, size = 0x200, scoped, tag = 'prefetched SMEM operand 0']
  %s0 = inlined_call_operand.<no memory space> [shape: f32[1], index: 0, kind: input, shape index: {}]
  %s1 = inlined_call_operand.vmem [shape: f32[1,2048], index: 1, kind: input, shape index: {}]
  %s2 = inlined_call_operand.vmem [shape: f32[1,2048], index: 2, kind: output, shape index: {}]
  %s3 = sld [smem:[#allocation0]]
  $region14: #{crelu.1} parent=0
    _
  %s5 = ssub.s32 1, %s3
  %s6 = scalar_select 0, %s5, %s3
  %7 = sst [smem:[#allocation3]] %s0
  // Predicated region
  $region2: #{crelu.1} parent=0 // pred_check
    _
  $region3: #{crelu.1} parent=0 // pred_check_branch
    %9 = sbr.rel (0) target = $region5
  $region4: #{crelu.1} parent=0 // pred_region
    _
  $region5: #{crelu.1} parent=0 // pred_fallthru
    _
  %s10 = sld [smem:[#allocation3]]
  %v11 = vld [vmem:[%s1] sm:$0xff]
  %v12 = vld [vmem:[%s1 + $0x8] sm:$0xff]
  %v13 = vstv %s10
  %vm14 = vcmp.ge.f32.partialorder %v11, %v13
  %vm15 = vcmp.ge.f32.partialorder %v12, %v13
  %v16 = vsel %vm14, 1, 0
  %v17 = vsel %vm15, 1, 0
  %v18 = vcvt.s32.f32 %v16
  %v19 = vcvt.s32.f32 %v17
  %v20 = vmul.f32 %v11, %v18
  %v21 = vmul.f32 %v12, %v19
  %22 = vst [vmem:[%s2] sm:$0xff] %v20
  %23 = vst [vmem:[%s2 + $0x8] sm:$0xff] %v21
  // Predicated region
  $region6: #{crelu.1} parent=0 // pred_check
    _
  $region7: #{crelu.1} parent=0 // pred_check_branch
    %25 = sbr.rel (0) target = $region9
  $region8: #{crelu.1} parent=0 // pred_region
    _
  $region9: #{crelu.1} parent=0 // pred_fallthru
    _
  // Predicated region
  $region10: #{crelu.1} parent=0 // pred_check
    _
  $region11: #{crelu.1} parent=0 // pred_check_branch
    %27 = sbr.rel (0) target = $region13
  $region12: #{crelu.1} parent=0 // pred_region
    _
  $region13: #{crelu.1} parent=0 // pred_fallthru
    _

</llo_original>
